<compile_context>
chip_gen: v5e
topology: v5e:2x2
jax: 0.10.0
libtpu: 0.0.40
codegen_flags: <defaults>
</compile_context>

<pallas_src>
import functools

import jax
import jax.numpy as jnp
import numpy as np
from jax.experimental import pallas as pl
from jax.experimental.pallas import tpu as pltpu

EPS = 1e-5
_VMEM_LIMIT = 32 * 1024 * 1024      # explicit scoped-VMEM budget (safe on v5e/v6e/v7x)
_TILE_BUDGET = 2 * 1024 * 1024      # per-tile byte budget (double-buffered in+out << 32 MiB)


def _pick_tiles(b, C, HW, itemsize, tile_budget_bytes=_TILE_BUDGET):
    """Pick (batch_tile, hw_tile) honoring the (8,128) lane constraint and VMEM budget."""
    if HW % 128 == 0:
        max_lanes = (tile_budget_bytes // max(1, C * itemsize)) // 128 * 128
        max_lanes = min(HW, max(128, max_lanes))
        thw = 128
        t = max_lanes
        while t >= 128:
            if HW % t == 0:
                thw = t
                break
            t -= 128
    else:
        # Last block dim must be a multiple of 128 or the full extent.
        thw = HW
    bt = 1
    for cand in range(1, b + 1):
        if b % cand == 0 and cand * C * thw * itemsize <= tile_budget_bytes:
            bt = cand
    return bt, thw


def _stats_kernel(x_ref, mean_ref, rstd_ref, *, inv_n):
    """Pass 1: accumulate per-channel sum / sum-of-squares; finalize mean & rstd."""
    bi, ti = pl.program_id(0), pl.program_id(1)
    first = (bi == 0) & (ti == 0)
    last = ((bi == pl.num_programs(0) - 1) &
            (ti == pl.num_programs(1) - 1))

    @pl.when(first)
    def _():
        mean_ref[...] = jnp.zeros_like(mean_ref)
        rstd_ref[...] = jnp.zeros_like(rstd_ref)

    x = x_ref[...].astype(jnp.float32)                 # (bt, C, thw) upcast in-register
    s = jnp.sum(x, axis=-1, keepdims=True)             # lane reduce  -> (bt, C, 1)
    sq = jnp.sum(x * x, axis=-1, keepdims=True)        # lane reduce  -> (bt, C, 1)
    mean_ref[...] += jnp.sum(s, axis=0)                # accumulate into resident (C, 1)
    rstd_ref[...] += jnp.sum(sq, axis=0)

    @pl.when(last)
    def _():
        mu = mean_ref[...] * inv_n
        var = jnp.maximum(rstd_ref[...] * inv_n - mu * mu, 0.0)  # biased variance
        mean_ref[...] = mu
        rstd_ref[...] = jax.lax.rsqrt(var + EPS)


def _norm_kernel(mean_ref, rstd_ref, x_ref, o_ref):
    """Pass 2: normalize one (bt, C, thw) tile with the precomputed (C,1) stats."""
    x = x_ref[...].astype(jnp.float32)
    o_ref[...] = ((x - mean_ref[...]) * rstd_ref[...]).astype(o_ref.dtype)


def lifted_batch_norm_2d(X):
    """X: (b, c, d, h, w). Returns normalized tensor of the same shape/dtype."""
    b, c, d, h, w = X.shape
    C = c * d
    HW = h * w
    N = b * HW

    # Free reshape (contiguous dim merge) -- no HBM transpose round-trip.
    # TODO(synk): if C is small and not 8-aligned (e.g. 12 here) a couple of
    # sublanes per vreg are padding; acceptable since the op is memory-bound.
    x3d = X.reshape(b, C, HW)
    itemsize = jnp.dtype(X.dtype).itemsize
    bt, thw = _pick_tiles(b, C, HW, itemsize)
    grid = (b // bt, HW // thw)

    x_spec = pl.BlockSpec((bt, C, thw), lambda bi, ti: (bi, 0, ti))
    stat_spec = pl.BlockSpec((C, 1), lambda bi, ti: (0, 0))

    # ---- Pass 1: per-channel mean / rstd ------------------------------------
    mean, rstd = pl.pallas_call(
        functools.partial(_stats_kernel, inv_n=1.0 / float(N)),
        out_shape=(jax.ShapeDtypeStruct((C, 1), jnp.float32),
                   jax.ShapeDtypeStruct((C, 1), jnp.float32)),
        grid=grid,
        in_specs=[x_spec],
        out_specs=(stat_spec, stat_spec),
        compiler_params=pltpu.CompilerParams(
            dimension_semantics=("arbitrary", "arbitrary"),
            vmem_limit_bytes=_VMEM_LIMIT),
    )(x3d)

    # ---- Pass 2: normalize ---------------------------------------------------
    out3d = pl.pallas_call(
        _norm_kernel,
        out_shape=jax.ShapeDtypeStruct((b, C, HW), X.dtype),
        grid=grid,
        in_specs=[stat_spec, stat_spec, x_spec],
        out_specs=x_spec,
        compiler_params=pltpu.CompilerParams(
            dimension_semantics=("parallel", "parallel"),
            vmem_limit_bytes=_VMEM_LIMIT),
    )(mean, rstd, x3d)

    return out3d.reshape(b, c, d, h, w)


def _reference(X):
    # Pure-JAX reference of training-mode BatchNorm2d(affine=False) on the
    # reshaped (b, c*d, h, w) tensor (biased variance, eps=1e-5).
    b, c, d, h, w = X.shape
    xr = X.reshape(b, c * d, h, w).astype(jnp.float32)
    mean = jnp.mean(xr, axis=(0, 2, 3), keepdims=True)
    var = jnp.mean((xr - mean) ** 2, axis=(0, 2, 3), keepdims=True)
    y = (xr - mean) / jnp.sqrt(var + EPS)
    return y.reshape(b, c, d, h, w).astype(X.dtype)


if __name__ == "__main__":
    # Module config: cin=4, cs of length 3 => channels = cin*len(cs) = 12.
    b, c, d, h, w = 2, 4, 3, 16, 16
    key = jax.random.PRNGKey(0)
    X = jax.random.normal(key, (b, c, d, h, w), dtype=jnp.float32)

    out = jax.block_until_ready(lifted_batch_norm_2d(X))

    ref = _reference(X)
    np.testing.assert_allclose(np.asarray(out), np.asarray(ref), rtol=1e-5, atol=1e-5)

    print("KERNEL_OK")
</pallas_src>

<mosaic_0001>
module attributes {stable_mosaic.version = 11 : i64} {
  func.func @_stats_kernel(%arg0: i32, %arg1: i32, %arg2: memref<2x12x256xf32, #tpu.memory_space<vmem>>, %arg3: memref<12x1xf32, #tpu.memory_space<vmem>>, %arg4: memref<12x1xf32, #tpu.memory_space<vmem>>) attributes {dimension_semantics = [#tpu.dimension_semantics<arbitrary>, #tpu.dimension_semantics<arbitrary>], iteration_bounds = array<i64: 1, 1>, scalar_prefetch = 0 : i64, scratch_operands = 0 : i64, tpu.core_type = #tpu.core_type<tc>, window_params = [{transform_indices = @transform_0, window_bounds = array<i64: 2, 12, 256>}, {pipeline_mode = #tpu.pipeline_mode<synchronous>, transform_indices = @transform_1, window_bounds = array<i64: 12, 1>}, {pipeline_mode = #tpu.pipeline_mode<synchronous>, transform_indices = @transform_2, window_bounds = array<i64: 12, 1>}]} {
    %c0_i32 = arith.constant 0 : i32
    %0 = arith.cmpi eq, %arg0, %c0_i32 : i32
    %c0_i32_0 = arith.constant 0 : i32
    %1 = arith.cmpi eq, %arg1, %c0_i32_0 : i32
    %2 = arith.andi %0, %1 : i1
    %c0_i32_1 = arith.constant 0 : i32
    %3 = arith.cmpi eq, %arg0, %c0_i32_1 : i32
    %c0_i32_2 = arith.constant 0 : i32
    %4 = arith.cmpi eq, %arg1, %c0_i32_2 : i32
    %5 = arith.andi %3, %4 : i1
    %6 = arith.extui %2 : i1 to i32
    %c0_i32_3 = arith.constant 0 : i32
    %7 = arith.cmpi ne, %6, %c0_i32_3 : i32
    scf.if %7 {
      %cst_18 = arith.constant 0.000000e+00 : f32
      %24 = vector.broadcast %cst_18 : f32 to vector<12x1xf32>
      %c0_19 = arith.constant 0 : index
      %c0_20 = arith.constant 0 : index
      %25 = vector.load %arg3[%c0_19, %c0_20] : memref<12x1xf32, #tpu.memory_space<vmem>>, vector<12x1xf32>
      tpu.vector_store %arg3[%c0_19, %c0_20], %24 {strides = array<i32>} : memref<12x1xf32, #tpu.memory_space<vmem>>, vector<12x1xf32>,
      %cst_21 = arith.constant 0.000000e+00 : f32
      %26 = vector.broadcast %cst_21 : f32 to vector<12x1xf32>
      %c0_22 = arith.constant 0 : index
      %c0_23 = arith.constant 0 : index
      %27 = vector.load %arg4[%c0_22, %c0_23] : memref<12x1xf32, #tpu.memory_space<vmem>>, vector<12x1xf32>
      tpu.vector_store %arg4[%c0_22, %c0_23], %26 {strides = array<i32>} : memref<12x1xf32, #tpu.memory_space<vmem>>, vector<12x1xf32>,
    } else {
    }
    %c0 = arith.constant 0 : index
    %c0_4 = arith.constant 0 : index
    %c0_5 = arith.constant 0 : index
    %8 = vector.load %arg2[%c0, %c0_4, %c0_5] : memref<2x12x256xf32, #tpu.memory_space<vmem>>, vector<2x12x256xf32>
    %cst = arith.constant dense<0.000000e+00> : vector<2x12xf32>
    %9 = vector.multi_reduction <add>, %8, %cst [2] : vector<2x12x256xf32> to vector<2x12xf32>
    %10 = vector.shape_cast %9 : vector<2x12xf32> to vector<2x12x1xf32>
    %11 = arith.mulf %8, %8 : vector<2x12x256xf32>
    %cst_6 = arith.constant dense<0.000000e+00> : vector<2x12xf32>
    %12 = vector.multi_reduction <add>, %11, %cst_6 [2] : vector<2x12x256xf32> to vector<2x12xf32>
    %13 = vector.shape_cast %12 : vector<2x12xf32> to vector<2x12x1xf32>
    %c0_7 = arith.constant 0 : index
    %c0_8 = arith.constant 0 : index
    %14 = vector.load %arg3[%c0_7, %c0_8] : memref<12x1xf32, #tpu.memory_space<vmem>>, vector<12x1xf32>
    %cst_9 = arith.constant dense<0.000000e+00> : vector<12x1xf32>
    %15 = vector.multi_reduction <add>, %10, %cst_9 [0] : vector<2x12x1xf32> to vector<12x1xf32>
    %16 = arith.addf %14, %15 : vector<12x1xf32>
    %c0_10 = arith.constant 0 : index
    %c0_11 = arith.constant 0 : index
    %17 = vector.load %arg3[%c0_10, %c0_11] : memref<12x1xf32, #tpu.memory_space<vmem>>, vector<12x1xf32>
    tpu.vector_store %arg3[%c0_10, %c0_11], %16 {strides = array<i32>} : memref<12x1xf32, #tpu.memory_space<vmem>>, vector<12x1xf32>,
    %c0_12 = arith.constant 0 : index
    %c0_13 = arith.constant 0 : index
    %18 = vector.load %arg4[%c0_12, %c0_13] : memref<12x1xf32, #tpu.memory_space<vmem>>, vector<12x1xf32>
    %cst_14 = arith.constant dense<0.000000e+00> : vector<12x1xf32>
    %19 = vector.multi_reduction <add>, %13, %cst_14 [0] : vector<2x12x1xf32> to vector<12x1xf32>
    %20 = arith.addf %18, %19 : vector<12x1xf32>
    %c0_15 = arith.constant 0 : index
    %c0_16 = arith.constant 0 : index
    %21 = vector.load %arg4[%c0_15, %c0_16] : memref<12x1xf32, #tpu.memory_space<vmem>>, vector<12x1xf32>
    tpu.vector_store %arg4[%c0_15, %c0_16], %20 {strides = array<i32>} : memref<12x1xf32, #tpu.memory_space<vmem>>, vector<12x1xf32>,
    %22 = arith.extui %5 : i1 to i32
    %c0_i32_17 = arith.constant 0 : i32
    %23 = arith.cmpi ne, %22, %c0_i32_17 : i32
    scf.if %23 {
      %c0_18 = arith.constant 0 : index
      %c0_19 = arith.constant 0 : index
      %24 = vector.load %arg3[%c0_18, %c0_19] : memref<12x1xf32, #tpu.memory_space<vmem>>, vector<12x1xf32>
      %cst_20 = arith.constant 0.001953125 : f32
      %25 = vector.broadcast %cst_20 : f32 to vector<12x1xf32>
      %26 = arith.mulf %24, %25 : vector<12x1xf32>
      %c0_21 = arith.constant 0 : index
      %c0_22 = arith.constant 0 : index
      %27 = vector.load %arg4[%c0_21, %c0_22] : memref<12x1xf32, #tpu.memory_space<vmem>>, vector<12x1xf32>
      %cst_23 = arith.constant 0.001953125 : f32
      %28 = vector.broadcast %cst_23 : f32 to vector<12x1xf32>
      %29 = arith.mulf %27, %28 : vector<12x1xf32>
      %30 = arith.mulf %26, %26 : vector<12x1xf32>
      %31 = arith.subf %29, %30 : vector<12x1xf32>
      %cst_24 = arith.constant 0.000000e+00 : f32
      %32 = vector.broadcast %cst_24 : f32 to vector<12x1xf32>
      %33 = arith.maximumf %31, %32 : vector<12x1xf32>
      %c0_25 = arith.constant 0 : index
      %c0_26 = arith.constant 0 : index
      %34 = vector.load %arg3[%c0_25, %c0_26] : memref<12x1xf32, #tpu.memory_space<vmem>>, vector<12x1xf32>
      tpu.vector_store %arg3[%c0_25, %c0_26], %26 {strides = array<i32>} : memref<12x1xf32, #tpu.memory_space<vmem>>, vector<12x1xf32>,
      %cst_27 = arith.constant 9.99999974E-6 : f32
      %35 = vector.broadcast %cst_27 : f32 to vector<12x1xf32>
      %36 = arith.addf %33, %35 : vector<12x1xf32>
      %37 = math.rsqrt %36 : vector<12x1xf32>
      %c0_28 = arith.constant 0 : index
      %c0_29 = arith.constant 0 : index
      %38 = vector.load %arg4[%c0_28, %c0_29] : memref<12x1xf32, #tpu.memory_space<vmem>>, vector<12x1xf32>
      tpu.vector_store %arg4[%c0_28, %c0_29], %37 {strides = array<i32>} : memref<12x1xf32, #tpu.memory_space<vmem>>, vector<12x1xf32>,
    } else {
    }
    return
  }
  func.func @transform_0(%arg0: i32, %arg1: i32) -> (i32, i32, i32) {
    %c0_i32 = arith.constant 0 : i32
    %c0_i32_0 = arith.constant 0 : i32
    return %arg0, %c0_i32, %arg1 : i32, i32, i32
  }
  func.func @transform_1(%arg0: i32, %arg1: i32) -> (i32, i32) {
    %c0_i32 = arith.constant 0 : i32
    %c0_i32_0 = arith.constant 0 : i32
    %c0_i32_1 = arith.constant 0 : i32
    return %c0_i32, %c0_i32_0 : i32, i32
  }
  func.func @transform_2(%arg0: i32, %arg1: i32) -> (i32, i32) {
    %c0_i32 = arith.constant 0 : i32
    %c0_i32_0 = arith.constant 0 : i32
    %c0_i32_1 = arith.constant 0 : i32
    return %c0_i32, %c0_i32_0 : i32, i32
  }
}

</mosaic_0001>

<llo_original>
// kernel: tpu_custom_call.1
$region0: #{tpu_custom_call.1}
  #allocation0 [shape = 'u32[]', space=smem, size = 0x4, offset = 0x4, fixed_abs, tag = 'smem constant byte address 0x4 - core index']
  #allocation1 [shape = 'u32[72,128]{1,0:T(1,128)}', space=vmem, size = 0x9000, scoped, tag = 'internal scratch']
  %s0 = inlined_call_operand.vmem [shape: f32[2,12,256], index: 0, kind: input, shape index: {}]
  %s1 = inlined_call_operand.vmem [shape: f32[12,1], index: 1, kind: output, shape index: {0}]
  %s2 = inlined_call_operand.vmem [shape: f32[12,1], index: 2, kind: output, shape index: {1}]
  %3 = xla_tuple %s1, %s2
  %s4 = sld [smem:[#allocation0]]
  $region30: #{tpu_custom_call.1} parent=0
    _
  %s6 = ssub.s32 1, %s4
  %s7 = scalar_select 0, %s6, %s4
  // Predicated region
  $region2: #{tpu_custom_call.1} parent=0 // pred_check
    _
  $region3: #{tpu_custom_call.1} parent=0 // pred_check_branch
    %9 = sbr.rel (0) target = $region5
  $region4: #{tpu_custom_call.1} parent=0 // pred_region
    _
  $region5: #{tpu_custom_call.1} parent=0 // pred_fallthru
    _
  %p10 = scmp.eq.s32.totalorder 0, 0
  %p11 = scmp.eq.s32.totalorder 0, 0
  %p12 = pnand %p10, %p11
  %p13 = pneg %p12
  // Predicated region
  $region6: #{tpu_custom_call.1} parent=0 // pred_check
    _
  $region7: #{tpu_custom_call.1} parent=0 // pred_check_branch
    %15 = sbr.rel (%p12) target = $region9
  $region8: #{tpu_custom_call.1} parent=0 // pred_region
    %vm16 = vcmask 7168
    %17 = vst.msk [vmem:[%s1] sm:$0xff] %vm16, 0.0
    %vm18 = vcmask 3072
    %19 = vst.msk [vmem:[%s1 + $0x8] sm:$0xf] %vm18, 0.0
    %20 = vst.msk [vmem:[%s2] sm:$0xff] %vm16, 0.0
    %21 = vst.msk [vmem:[%s2 + $0x8] sm:$0xf] %vm18, 0.0
  $region9: #{tpu_custom_call.1} parent=0 // pred_fallthru
    _
  %v22 = vld [vmem:[%s0] sm:$0xff]
  %v23 = vld [vmem:[%s0 + $0x8] sm:$0xff]
  %v24 = vld [vmem:[%s0 + $0x10] sm:$0xf]
  %v25 = vld [vmem:[%s0 + $0x18] sm:$0xf]
  %v26 = vld [vmem:[%s0 + $0x20] sm:$0xff]
  %v27 = vld [vmem:[%s0 + $0x28] sm:$0xff]
  %v28 = vld [vmem:[%s0 + $0x30] sm:$0xf]
  %v29 = vld [vmem:[%s0 + $0x38] sm:$0xf]
  %v30 = vadd.f32 %v22, %v23
  %31 = vadd.xlane.f32.xlu0 %v30
  %v32 = vpop.xlane.xlu0 %31
  %vm33 = vcmask 1043456
  %v34 = vsel %vm33, %v24, 0.0
  %v35 = vsel %vm33, %v25, 0.0
  %v36 = vadd.f32 %v34, %v35
  %37 = vadd.xlane.f32.xlu0 %v36
  %v38 = vpop.xlane.xlu0 %37
  %v39 = vadd.f32 %v26, %v27
  %40 = vadd.xlane.f32.xlu0 %v39
  %v41 = vpop.xlane.xlu0 %40
  %v42 = vsel %vm33, %v28, 0.0
  %v43 = vsel %vm33, %v29, 0.0
  %v44 = vadd.f32 %v42, %v43
  %45 = vadd.xlane.f32.xlu0 %v44
  %v46 = vpop.xlane.xlu0 %45
  %v47 = vmul.f32 %v22, %v22
  %v48 = vmul.f32 %v23, %v23
  %v49 = vmul.f32 %v24, %v24
  %v50 = vmul.f32 %v25, %v25
  %v51 = vmul.f32 %v26, %v26
  %v52 = vmul.f32 %v27, %v27
  %v53 = vmul.f32 %v28, %v28
  %v54 = vmul.f32 %v29, %v29
  %v55 = vadd.f32 %v47, %v48
  %56 = vadd.xlane.f32.xlu0 %v55
  %v57 = vpop.xlane.xlu0 %56
  %v58 = vsel %vm33, %v49, 0.0
  %v59 = vsel %vm33, %v50, 0.0
  %v60 = vadd.f32 %v58, %v59
  %61 = vadd.xlane.f32.xlu0 %v60
  %v62 = vpop.xlane.xlu0 %61
  %v63 = vadd.f32 %v51, %v52
  %64 = vadd.xlane.f32.xlu0 %v63
  %v65 = vpop.xlane.xlu0 %64
  %v66 = vsel %vm33, %v53, 0.0
  %v67 = vsel %vm33, %v54, 0.0
  %v68 = vadd.f32 %v66, %v67
  %69 = vadd.xlane.f32.xlu0 %v68
  %v70 = vpop.xlane.xlu0 %69
  %v71 = vld [vmem:[%s1] sm:$0xff]
  %v72 = vld [vmem:[%s1 + $0x8] sm:$0xf]
  %v73 = vadd.f32 %v32, %v41
  %v74 = vsel %vm33, %v38, 0.0
  %v75 = vsel %vm33, %v46, 0.0
  %v76 = vadd.f32 %v74, %v75
  %v77 = vadd.f32 %v71, %v73
  %v78 = vadd.f32 %v72, %v76
  %vm79 = vcmask 7168
  %80 = vst.msk [vmem:[%s1] sm:$0xff] %vm79, %v77
  %vm81 = vcmask 3072
  %82 = vst.msk [vmem:[%s1 + $0x8] sm:$0xf] %vm81, %v78
  %v83 = vld [vmem:[%s2] sm:$0xff]
  %v84 = vld [vmem:[%s2 + $0x8] sm:$0xf]
  %v85 = vadd.f32 %v57, %v65
  %v86 = vsel %vm33, %v62, 0.0
  %v87 = vsel %vm33, %v70, 0.0
  %v88 = vadd.f32 %v86, %v87
  %v89 = vadd.f32 %v83, %v85
  %v90 = vadd.f32 %v84, %v88
  %91 = vst.msk [vmem:[%s2] sm:$0xff] %vm79, %v89
  %92 = vst.msk [vmem:[%s2 + $0x8] sm:$0xf] %vm81, %v90
  // Predicated region
  $region10: #{tpu_custom_call.1} parent=0 // pred_check
    _
  $region11: #{tpu_custom_call.1} parent=0 // pred_check_branch
    %94 = sbr.rel (%p12) target = $region13
  $region12: #{tpu_custom_call.1} parent=0 // pred_region
    %v95 = vld [vmem:[%s1] sm:$0xff]
    %v96 = vld [vmem:[%s1 + $0x8] sm:$0xf]
    %v97 = vmul.f32 %v95, 0.001953125
    %v98 = vmul.f32 %v96, 0.001953125
    %v99 = vld [vmem:[%s2] sm:$0xff]
    %v100 = vld [vmem:[%s2 + $0x8] sm:$0xf]
    %v101 = vmul.f32 %v99, 0.001953125
    %v102 = vmul.f32 %v100, 0.001953125
    %v103 = vmul.f32 %v97, %v97
    %v104 = vmul.f32 %v98, %v98
    %v105 = vsub.f32 %v101, %v103
    %v106 = vsub.f32 %v102, %v104
    %v107 = vmax.f32 %v105, 0.0
    %v108 = vmax.f32 %v106, 0.0
    %109 = vst.msk [vmem:[%s1] sm:$0xff] %vm79, %v97
    %110 = vst.msk [vmem:[%s1 + $0x8] sm:$0xf] %vm81, %v98
    %v111 = vadd.f32 %v107, 1e-05
    %v112 = vadd.f32 %v108, 1e-05
    %v113 = vrsqrt.pop %v111
    %v114 = vmul.f32 %v113, %v111
    %v115 = vmul.f32 %v114, %v113
    %v116 = vmul.f32 0.5, %v115
    %v117 = vsub.f32 1.5, %v116
    %v118 = vmul.f32 %v113, %v117
    %vm119 = vweird.f32 %v111
    %vm120 = vweird.f32 %v113
    %vm121 = vmor %vm119, %vm120
    %v122 = vsel %vm121, %v113, %v118
    %v123 = vrsqrt.pop %v112
    %v124 = vmul.f32 %v123, %v112
    %v125 = vmul.f32 %v124, %v123
    %v126 = vmul.f32 0.5, %v125
    %v127 = vsub.f32 1.5, %v126
    %v128 = vmul.f32 %v123, %v127
    %vm129 = vweird.f32 %v112
    %vm130 = vweird.f32 %v123
    %vm131 = vmor %vm129, %vm130
    %v132 = vsel %vm131, %v123, %v128
    %133 = vst.msk [vmem:[%s2] sm:$0xff] %vm79, %v122
    %134 = vst.msk [vmem:[%s2 + $0x8] sm:$0xf] %vm81, %v132
  $region13: #{tpu_custom_call.1} parent=0 // pred_fallthru
    _
  // Predicated region
  $region14: #{tpu_custom_call.1} parent=0 // pred_check
    _
  $region15: #{tpu_custom_call.1} parent=0 // pred_check_branch
    %136 = sbr.rel (0) target = $region17
  $region16: #{tpu_custom_call.1} parent=0 // pred_region
    _
  $region17: #{tpu_custom_call.1} parent=0 // pred_fallthru
    _
  // Predicated region
  $region18: #{tpu_custom_call.1} parent=0 // pred_check
    _
  $region19: #{tpu_custom_call.1} parent=0 // pred_check_branch
    %138 = sbr.rel (0) target = $region21
  $region20: #{tpu_custom_call.1} parent=0 // pred_region
    _
  $region21: #{tpu_custom_call.1} parent=0 // pred_fallthru
    _
  // Predicated region
  $region22: #{tpu_custom_call.1} parent=0 // pred_check
    _
  $region23: #{tpu_custom_call.1} parent=0 // pred_check_branch
    %140 = sbr.rel (0) target = $region25
  $region24: #{tpu_custom_call.1} parent=0 // pred_region
    _
  $region25: #{tpu_custom_call.1} parent=0 // pred_fallthru
    _
  // Predicated region
  $region26: #{tpu_custom_call.1} parent=0 // pred_check
    _
  $region27: #{tpu_custom_call.1} parent=0 // pred_check_branch
    %142 = sbr.rel (0) target = $region29
  $region28: #{tpu_custom_call.1} parent=0 // pred_region
    _
  $region29: #{tpu_custom_call.1} parent=0 // pred_fallthru
    _

</llo_original>
